<compile_context>
chip_gen: v7x
topology: tpu7x:2x2x1
jax: 0.10.0
libtpu: 0.0.40
codegen_flags: <defaults>
</compile_context>

<pallas_src>
import functools

import jax
import jax.numpy as jnp
from jax.experimental import pallas as pl
from jax.experimental.pallas import tpu as pltpu

H1, H2, OUT = 256, 128, 28 * 28


def _round_up(x, m):
    return ((x + m - 1) // m) * m


def _cdiv(a, b):
    return -(-a // b)


def _choose_tm(batch, max_tm=1024):
    """Batch tile: multiple of 8, <= max_tm, >=2 tiles for large batches,
    and sized to minimise padding waste for awkward batch sizes."""
    b8 = _round_up(max(batch, 1), 8)
    if b8 < 512:
        return b8                      # single tile, minimal padding
    n_tiles = max(2, _cdiv(b8, max_tm))  # >=2 so v7x megacore can shard
    return _round_up(_cdiv(b8, n_tiles), 8)


def _bf16_epilogue_default():
    """bf16 VPU/EUP exists on v6e (Trillium) and v7x; not on v5e."""
    try:
        kind = jax.devices()[0].device_kind.lower()
    except Exception:
        return False
    return any(tag in kind for tag in ("v6", "trillium", "v7"))


def _generator_kernel(x_ref, w1_ref, b1_ref, w2_ref, b2_ref, w3_ref, b3_ref,
                      out_ref, *, bf16_epilogue):
    # x streamed per batch tile as f32; cast to bf16 here (MXU operand).
    x = x_ref[...].astype(jnp.bfloat16)
    # fc1 + ReLU (bf16 MXU operands, f32 accumulation)
    h1 = jnp.dot(x, w1_ref[...], preferred_element_type=jnp.float32)
    h1 = jnp.maximum(h1 + b1_ref[...], 0.0)
    # fc2 + ReLU
    h2 = jnp.dot(h1.astype(jnp.bfloat16), w2_ref[...],
                 preferred_element_type=jnp.float32)
    h2 = jnp.maximum(h2 + b2_ref[...], 0.0)
    # fc3: w3/b3 are pre-scaled by 0.5 in prepare_params(), so
    # sigmoid(z) = 0.5*tanh(0.5*z) + 0.5 = 0.5*tanh(logits) + 0.5  here.
    logits = jnp.dot(h2.astype(jnp.bfloat16), w3_ref[...],
                     preferred_element_type=jnp.float32)
    logits = logits + b3_ref[...]
    if bf16_epilogue:
        # bf16 tanh/mul/add halves EUP pushes + VPU passes + store width on
        # chips with bf16 vector units (v6e/v7x).
        logits = logits.astype(jnp.bfloat16)
    y = jnp.tanh(logits) * 0.5 + 0.5     # weak-typed 0.5 keeps logits' dtype
    out_ref[...] = y.astype(out_ref.dtype)


def prepare_params(params):
    """One-time weight transform: bf16 MXU weights, sigmoid 0.5-scale folded
    into w3/b3. Call once and reuse across forwards (e.g. a sampling loop)."""
    w1, b1, w2, b2, w3, b3 = params
    return (
        w1.astype(jnp.bfloat16), b1.astype(jnp.float32),
        w2.astype(jnp.bfloat16), b2.astype(jnp.float32),
        (0.5 * w3).astype(jnp.bfloat16), (0.5 * b3).astype(jnp.float32),
    )


def generator_forward(x, prepared_params, *, max_tm=1024,
                      out_dtype=jnp.float32, bf16_epilogue=None):
    """x: (B, Z) float32. prepared_params: output of prepare_params().
    Returns (B, 1, 28, 28) in out_dtype (f32 by default, matching torch)."""
    w1b, b1, w2b, b2, w3b, b3 = prepared_params
    B, Z = x.shape

    if bf16_epilogue is None:
        bf16_epilogue = _bf16_epilogue_default()

    TM = _choose_tm(B, max_tm)
    B_pad = _round_up(B, TM)
    x_p = x if B_pad == B else jnp.pad(x, ((0, B_pad - B), (0, 0)))

    grid = (B_pad // TM,)
    out_bytes = jnp.dtype(out_dtype).itemsize
    flops = 2 * B_pad * (Z * H1 + H1 * H2 + H2 * OUT)
    bytes_accessed = (
        x_p.size * 4
        + (w1b.size + w2b.size + w3b.size) * 2
        + (b1.size + b2.size + b3.size) * 4
        + B_pad * OUT * out_bytes
    )

    kernel = functools.partial(_generator_kernel, bf16_epilogue=bf16_epilogue)

    out_flat = pl.pallas_call(
        kernel,
        out_shape=jax.ShapeDtypeStruct((B_pad, OUT), out_dtype),
        grid=grid,
        in_specs=[
            pl.BlockSpec((TM, Z), lambda i: (i, 0)),     # x: streamed per tile
            pl.BlockSpec((Z, H1), lambda i: (0, 0)),     # w1: VMEM-resident
            pl.BlockSpec((1, H1), lambda i: (0, 0)),     # b1
            pl.BlockSpec((H1, H2), lambda i: (0, 0)),    # w2
            pl.BlockSpec((1, H2), lambda i: (0, 0)),     # b2
            pl.BlockSpec((H2, OUT), lambda i: (0, 0)),   # w3 (0.5-folded)
            pl.BlockSpec((1, OUT), lambda i: (0, 0)),    # b3 (0.5-folded)
        ],
        out_specs=pl.BlockSpec((TM, OUT), lambda i: (i, 0)),
        compiler_params=pltpu.CompilerParams(
            dimension_semantics=("parallel",)),
        cost_estimate=pl.CostEstimate(
            flops=flops,
            transcendentals=B_pad * OUT,
            bytes_accessed=bytes_accessed),
    )(x_p, w1b, b1, w2b, b2, w3b, b3)

    # NCHW, same as the torch module's reshape.
    return out_flat[:B].reshape((B, 1, 28, 28))


def init_params(key, z_dim):
    """Deterministic PyTorch-Linear-style init: U(-1/sqrt(fan_in), 1/sqrt(fan_in))."""
    dims = [(z_dim, H1), (H1, H2), (H2, OUT)]
    params = []
    for fan_in, fan_out in dims:
        kw, kb, key = jax.random.split(key, 3)
        bound = 1.0 / (fan_in ** 0.5)
        w = jax.random.uniform(kw, (fan_in, fan_out), jnp.float32, -bound, bound)
        # biases kept 2D (1, fan_out) so they broadcast cleanly in the kernel
        b = jax.random.uniform(kb, (1, fan_out), jnp.float32, -bound, bound)
        params.extend([w, b])
    return tuple(params)


def _reference_forward(x, params):
    """Pure-JAX f32 reference (exact sigmoid)."""
    w1, b1, w2, b2, w3, b3 = params
    h = jnp.maximum(x @ w1 + b1, 0.0)
    h = jnp.maximum(h @ w2 + b2, 0.0)
    y = jax.nn.sigmoid(h @ w3 + b3)
    return y.reshape((x.shape[0], 1, 28, 28))


if __name__ == "__main__":
    key = jax.random.PRNGKey(0)
    Z = 32   # latent dim
    B = 2    # batch

    k_x, k_p = jax.random.split(key)
    x = jax.random.normal(k_x, (B, Z), dtype=jnp.float32)
    params = init_params(k_p, Z)

    prep = prepare_params(params)          # one-time bf16 / 0.5-fold transform
    out = generator_forward(x, prep)
    out = jax.block_until_ready(out)

    ref = _reference_forward(x, params)
    assert out.shape == (B, 1, 28, 28), out.shape
    # bf16 matmul operands (and optional bf16 epilogue) vs f32 reference.
    assert jnp.allclose(out, ref, atol=2e-2, rtol=0.0), "mismatch vs reference"

    print("KERNEL_OK")
</pallas_src>

<mosaic_0001>
module attributes {stable_mosaic.version = 11 : i64} {
  func.func @_generator_kernel(%arg0: i32, %arg1: memref<8x32xf32, #tpu.memory_space<vmem>>, %arg2: memref<32x256xbf16, #tpu.memory_space<vmem>>, %arg3: memref<1x256xf32, #tpu.memory_space<vmem>>, %arg4: memref<256x128xbf16, #tpu.memory_space<vmem>>, %arg5: memref<1x128xf32, #tpu.memory_space<vmem>>, %arg6: memref<128x784xbf16, #tpu.memory_space<vmem>>, %arg7: memref<1x784xf32, #tpu.memory_space<vmem>>, %arg8: memref<8x784xf32, #tpu.memory_space<vmem>>) attributes {dimension_semantics = [#tpu.dimension_semantics<parallel>], iteration_bounds = array<i64: 1>, scalar_prefetch = 0 : i64, scratch_operands = 0 : i64, tpu.core_type = #tpu.core_type<tc>, window_params = [{transform_indices = @transform_0, window_bounds = array<i64: 8, 32>}, {pipeline_mode = #tpu.pipeline_mode<synchronous>, transform_indices = @transform_1, window_bounds = array<i64: 32, 256>}, {pipeline_mode = #tpu.pipeline_mode<synchronous>, transform_indices = @transform_2, window_bounds = array<i64: 1, 256>}, {pipeline_mode = #tpu.pipeline_mode<synchronous>, transform_indices = @transform_3, window_bounds = array<i64: 256, 128>}, {pipeline_mode = #tpu.pipeline_mode<synchronous>, transform_indices = @transform_4, window_bounds = array<i64: 1, 128>}, {pipeline_mode = #tpu.pipeline_mode<synchronous>, transform_indices = @transform_5, window_bounds = array<i64: 128, 784>}, {pipeline_mode = #tpu.pipeline_mode<synchronous>, transform_indices = @transform_6, window_bounds = array<i64: 1, 784>}, {transform_indices = @transform_7, window_bounds = array<i64: 8, 784>}]} {
    %c0 = arith.constant 0 : index
    %c0_0 = arith.constant 0 : index
    %0 = vector.load %arg1[%c0, %c0_0] : memref<8x32xf32, #tpu.memory_space<vmem>>, vector<8x32xf32>
    %1 = arith.truncf %0 : vector<8x32xf32> to vector<8x32xbf16>
    %c0_1 = arith.constant 0 : index
    %c0_2 = arith.constant 0 : index
    %2 = vector.load %arg2[%c0_1, %c0_2] : memref<32x256xbf16, #tpu.memory_space<vmem>>, vector<32x256xbf16>
    %cst = arith.constant dense<0.000000e+00> : vector<8x256xf32>
    %3 = tpu.matmul %1, %2, %cst {dimension_numbers = #tpu.dot_dimension_numbers<[1], [0], [0], [1], [0, 0, 1, 1], [], []>} : vector<8x32xbf16>, vector<32x256xbf16>, vector<8x256xf32> -> vector<8x256xf32>
    %c0_3 = arith.constant 0 : index
    %c0_4 = arith.constant 0 : index
    %4 = vector.load %arg3[%c0_3, %c0_4] : memref<1x256xf32, #tpu.memory_space<vmem>>, vector<1x256xf32>
    %5 = vector.broadcast %4 : vector<1x256xf32> to vector<8x256xf32>
    %6 = arith.addf %3, %5 : vector<8x256xf32>
    %cst_5 = arith.constant 0.000000e+00 : f32
    %7 = vector.broadcast %cst_5 : f32 to vector<8x256xf32>
    %8 = arith.maximumf %6, %7 : vector<8x256xf32>
    %9 = arith.truncf %8 : vector<8x256xf32> to vector<8x256xbf16>
    %c0_6 = arith.constant 0 : index
    %c0_7 = arith.constant 0 : index
    %10 = vector.load %arg4[%c0_6, %c0_7] : memref<256x128xbf16, #tpu.memory_space<vmem>>, vector<256x128xbf16>
    %cst_8 = arith.constant dense<0.000000e+00> : vector<8x128xf32>
    %11 = tpu.matmul %9, %10, %cst_8 {dimension_numbers = #tpu.dot_dimension_numbers<[1], [0], [0], [1], [0, 0, 1, 1], [], []>} : vector<8x256xbf16>, vector<256x128xbf16>, vector<8x128xf32> -> vector<8x128xf32>
    %c0_9 = arith.constant 0 : index
    %c0_10 = arith.constant 0 : index
    %12 = vector.load %arg5[%c0_9, %c0_10] : memref<1x128xf32, #tpu.memory_space<vmem>>, vector<1x128xf32>
    %13 = vector.broadcast %12 : vector<1x128xf32> to vector<8x128xf32>
    %14 = arith.addf %11, %13 : vector<8x128xf32>
    %cst_11 = arith.constant 0.000000e+00 : f32
    %15 = vector.broadcast %cst_11 : f32 to vector<8x128xf32>
    %16 = arith.maximumf %14, %15 : vector<8x128xf32>
    %17 = arith.truncf %16 : vector<8x128xf32> to vector<8x128xbf16>
    %c0_12 = arith.constant 0 : index
    %c0_13 = arith.constant 0 : index
    %18 = vector.load %arg6[%c0_12, %c0_13] : memref<128x784xbf16, #tpu.memory_space<vmem>>, vector<128x784xbf16>
    %cst_14 = arith.constant dense<0.000000e+00> : vector<8x784xf32>
    %19 = tpu.matmul %17, %18, %cst_14 {dimension_numbers = #tpu.dot_dimension_numbers<[1], [0], [0], [1], [0, 0, 1, 1], [], []>} : vector<8x128xbf16>, vector<128x784xbf16>, vector<8x784xf32> -> vector<8x784xf32>
    %c0_15 = arith.constant 0 : index
    %c0_16 = arith.constant 0 : index
    %20 = vector.load %arg7[%c0_15, %c0_16] : memref<1x784xf32, #tpu.memory_space<vmem>>, vector<1x784xf32>
    %21 = vector.broadcast %20 : vector<1x784xf32> to vector<8x784xf32>
    %22 = arith.addf %19, %21 : vector<8x784xf32>
    %23 = math.tanh %22 : vector<8x784xf32>
    %cst_17 = arith.constant 5.000000e-01 : f32
    %24 = vector.broadcast %cst_17 : f32 to vector<8x784xf32>
    %25 = arith.mulf %23, %24 : vector<8x784xf32>
    %cst_18 = arith.constant 5.000000e-01 : f32
    %26 = vector.broadcast %cst_18 : f32 to vector<8x784xf32>
    %27 = arith.addf %25, %26 : vector<8x784xf32>
    %c0_19 = arith.constant 0 : index
    %c0_20 = arith.constant 0 : index
    %28 = vector.load %arg8[%c0_19, %c0_20] : memref<8x784xf32, #tpu.memory_space<vmem>>, vector<8x784xf32>
    tpu.vector_store %arg8[%c0_19, %c0_20], %27 {strides = array<i32>} : memref<8x784xf32, #tpu.memory_space<vmem>>, vector<8x784xf32>,
    return
  }
  func.func @transform_0(%arg0: i32) -> (i32, i32) {
    %c0_i32 = arith.constant 0 : i32
    %c0_i32_0 = arith.constant 0 : i32
    return %arg0, %c0_i32 : i32, i32
  }
  func.func @transform_1(%arg0: i32) -> (i32, i32) {
    %c0_i32 = arith.constant 0 : i32
    %c0_i32_0 = arith.constant 0 : i32
    %c0_i32_1 = arith.constant 0 : i32
    return %c0_i32, %c0_i32_0 : i32, i32
  }
  func.func @transform_2(%arg0: i32) -> (i32, i32) {
    %c0_i32 = arith.constant 0 : i32
    %c0_i32_0 = arith.constant 0 : i32
    %c0_i32_1 = arith.constant 0 : i32
    return %c0_i32, %c0_i32_0 : i32, i32
  }
  func.func @transform_3(%arg0: i32) -> (i32, i32) {
    %c0_i32 = arith.constant 0 : i32
    %c0_i32_0 = arith.constant 0 : i32
    %c0_i32_1 = arith.constant 0 : i32
    return %c0_i32, %c0_i32_0 : i32, i32
  }
  func.func @transform_4(%arg0: i32) -> (i32, i32) {
    %c0_i32 = arith.constant 0 : i32
    %c0_i32_0 = arith.constant 0 : i32
    %c0_i32_1 = arith.constant 0 : i32
    return %c0_i32, %c0_i32_0 : i32, i32
  }
  func.func @transform_5(%arg0: i32) -> (i32, i32) {
    %c0_i32 = arith.constant 0 : i32
    %c0_i32_0 = arith.constant 0 : i32
    %c0_i32_1 = arith.constant 0 : i32
    return %c0_i32, %c0_i32_0 : i32, i32
  }
  func.func @transform_6(%arg0: i32) -> (i32, i32) {
    %c0_i32 = arith.constant 0 : i32
    %c0_i32_0 = arith.constant 0 : i32
    %c0_i32_1 = arith.constant 0 : i32
    return %c0_i32, %c0_i32_0 : i32, i32
  }
  func.func @transform_7(%arg0: i32) -> (i32, i32) {
    %c0_i32 = arith.constant 0 : i32
    %c0_i32_0 = arith.constant 0 : i32
    return %arg0, %c0_i32 : i32, i32
  }
}

</mosaic_0001>

<llo_original>
// kernel: tpu_custom_call.1
$region0: #{tpu_custom_call.1}
  #allocation0 [shape = 'u32[]', space=smem, size = 0x4, offset = 0x4, fixed_abs, tag = 'smem constant byte address 0x4 - core index']
  #allocation1 [shape = 'u32[144,128]{1,0:T(1,128)}', space=vmem, size = 0x12000, scoped, tag = 'internal scratch']
  %s0 = inlined_call_operand.vmem [shape: f32[8,32], index: 0, kind: input, shape index: {}]
  %s1 = inlined_call_operand.vmem [shape: bf16[32,256], index: 1, kind: input, shape index: {}]
  %s2 = inlined_call_operand.vmem [shape: f32[1,256], index: 2, kind: input, shape index: {}]
  %s3 = inlined_call_operand.vmem [shape: bf16[256,128], index: 3, kind: input, shape index: {}]
  %s4 = inlined_call_operand.vmem [shape: f32[1,128], index: 4, kind: input, shape index: {}]
  %s5 = inlined_call_operand.vmem [shape: bf16[128,784], index: 5, kind: input, shape index: {}]
  %s6 = inlined_call_operand.vmem [shape: f32[1,784], index: 6, kind: input, shape index: {}]
  %s7 = inlined_call_operand.hbm [shape: f32[8,784], index: 7, kind: output, shape index: {}]
  %s8 = sld [smem:[#allocation0]]
  $region38: #{tpu_custom_call.1} parent=0
    _
  %s10 = ssub.s32 1, %s8
  %s11 = scalar_select 0, %s10, %s8
  $region1: #{tpu_custom_call.1} parent=0
    #allocation2 [shape = 'u8[28672]{0}', space=vmem, size = 0x7000, scoped, tag = 'output window, operand 0, single buffered']
    #allocation3 [shape = 's32[1]{0}', space=sflag, size = 0x4, scoped, tag = 'scoped memory for tpu_custom_call.1']
    %12 = vsyncpa [#allocation3], 0
    // Predicated region
    $region2: #{tpu_custom_call.1} parent=1 // pred_check
      _
    $region3: #{tpu_custom_call.1} parent=1 // pred_check_branch
      %14 = sbr.rel (0) target = $region5
    $region4: #{tpu_custom_call.1} parent=1 // pred_region
      _
    $region5: #{tpu_custom_call.1} parent=1 // pred_fallthru
      _
    // Predicated region
    $region6: #{tpu_custom_call.1} parent=1 // pred_check
      _
    $region7: #{tpu_custom_call.1} parent=1 // pred_check_branch
      %16 = sbr.rel (0) target = $region9
    $region8: #{tpu_custom_call.1} parent=1 // pred_region
      _
    $region9: #{tpu_custom_call.1} parent=1 // pred_fallthru
      _
    // Predicated region
    $region10: #{tpu_custom_call.1} parent=1 // pred_check
      _
    $region11: #{tpu_custom_call.1} parent=1 // pred_check_branch
      %18 = sbr.rel (0) target = $region13
    $region12: #{tpu_custom_call.1} parent=1 // pred_region
      _
    $region13: #{tpu_custom_call.1} parent=1 // pred_fallthru
      _
    // Predicated region
    $region14: #{tpu_custom_call.1} parent=1 // pred_check
      _
    $region15: #{tpu_custom_call.1} parent=1 // pred_check_branch
      %20 = sbr.rel (0) target = $region17
    $region16: #{tpu_custom_call.1} parent=1 // pred_region
      _
    $region17: #{tpu_custom_call.1} parent=1 // pred_fallthru
      _
    // Predicated region
    $region18: #{tpu_custom_call.1} parent=1 // pred_check
      _
    $region19: #{tpu_custom_call.1} parent=1 // pred_check_branch
      %22 = sbr.rel (0) target = $region21
    $region20: #{tpu_custom_call.1} parent=1 // pred_region
      _
    $region21: #{tpu_custom_call.1} parent=1 // pred_fallthru
      _
    // Predicated region
    $region22: #{tpu_custom_call.1} parent=1 // pred_check
      _
    $region23: #{tpu_custom_call.1} parent=1 // pred_check_branch
      %24 = sbr.rel (0) target = $region25
    $region24: #{tpu_custom_call.1} parent=1 // pred_region
      _
    $region25: #{tpu_custom_call.1} parent=1 // pred_fallthru
      _
    // Predicated region
    $region26: #{tpu_custom_call.1} parent=1 // pred_check
      _
    $region27: #{tpu_custom_call.1} parent=1 // pred_check_branch
      %26 = sbr.rel (0) target = $region29
    $region28: #{tpu_custom_call.1} parent=1 // pred_region
      _
    $region29: #{tpu_custom_call.1} parent=1 // pred_fallthru
      _
    %v28 = vld [vmem:[%s0] sm:$0xff]
    %v29 = vpack.c.bf16 %v28, %v28
    %v30 = vld [vmem:[%s1] sm:$0xff]
    %v31 = vld [vmem:[%s1 + $0x8] sm:$0xff]
    %v32 = vld [vmem:[%s1 + $0x10] sm:$0xff]
    %v33 = vld [vmem:[%s1 + $0x18] sm:$0xff]
    %v34 = vld [vmem:[%s2] sm:$0x3]
    %v36 = vlaneseq
    %v37 = vshrl.u32 %v36, 7
    %v38 = vsub.s32 0, %v37
    %v39 = vrot.slane %v34, %v38
    %v40 = vlaneseq
    %v41 = vshrl.u32 %v40, 7
    %v42 = vsub.s32 1, %v41
    %v43 = vrot.slane %v34, %v42
    %v50 = vunpack.c.l.b16 %v30
    %v51 = vunpack.c.h.b16 %v30
    %v52 = vunpack.c.l.b16 %v31
    %v53 = vunpack.c.h.b16 %v31
    %v54 = vunpack.c.l.b16 %v32
    %v55 = vunpack.c.h.b16 %v32
    %v56 = vunpack.c.l.b16 %v33
    %v57 = vunpack.c.h.b16 %v33
    %v58 = vpack.c.b16 %v52, %v50
    %v59 = vpack.c.b16 %v53, %v51
    %v60 = vpack.c.b16 %v56, %v54
    %v61 = vpack.c.b16 %v57, %v55
    %vm66 = vcmask 261120
    %v68 = vsel %vm66, %v29, 0
    %70 = vmatprep.subr.bf16.mxu0 %v59
    %71 = vmatpush1.bf16.msra.mxu0 %v58
    %72 = vmatprep.subr.bf16.mxu0 %v61
    %73 = vmatpush1.bf16.msra.mxu0 %v60
    %74 = vmatprep.subr.bf16.mxu0 0
    %75 = vmatpush1.bf16.msra.mxu0 0
    %76 = vmatprep.subr.bf16.mxu0 0
    %77 = vmatpush1.bf16.msra.mxu0 0
    %78 = vmatprep.subr.bf16.mxu0 0
    %79 = vmatpush1.bf16.msra.mxu0 0
    %80 = vmatprep.subr.bf16.mxu0 0
    %81 = vmatpush1.bf16.msra.mxu0 0
    %82 = vmatprep.subr.bf16.mxu0 0
    %83 = vmatpush1.bf16.msra.mxu0 0
    %84 = vmatprep.subr.bf16.mxu0 0
    %85 = vmatpush1.bf16.msra.mxu0 0
    %86 = vmatprep.subr.bf16.mxu0 0
    %87 = vmatpush1.bf16.msra.mxu0 0
    %88 = vmatprep.subr.bf16.mxu0 0
    %89 = vmatpush1.bf16.msra.mxu0 0
    %90 = vmatprep.subr.bf16.mxu0 0
    %91 = vmatpush1.bf16.msra.mxu0 0
    %92 = vmatprep.subr.bf16.mxu0 0
    %93 = vmatpush1.bf16.msra.mxu0 0
    %94 = vmatprep.subr.bf16.mxu0 0
    %95 = vmatpush1.bf16.msra.mxu0 0
    %96 = vmatprep.subr.bf16.mxu0 0
    %97 = vmatpush1.bf16.msra.mxu0 0
    %98 = vmatprep.subr.bf16.mxu0 0
    %99 = vmatpush1.bf16.msra.mxu0 0
    %100 = vmatprep.subr.bf16.mxu0 0
    %101 = vmatpush1.bf16.msra.mxu0 0
    %102 = vmatprep.mubr.bf16.mxu0 0
    %103 = vmatmul.mubr.bf16.gmra.mrb[0].mxu0 %v68
    %v104 = vpop.f32.mrb[0].mxu0
    %v105 = vadd.f32 %v39, %v104
    %v106 = vpop.f32.mrb[0].mxu0
    %v107 = vadd.f32 %v43, %v106
    %v108 = vpop.f32.mrb[0].mxu0
    %v109 = vpop.f32.mrb[0].mxu0
    %110 = vdwg.mxu0
    %v111 = vmax.f32 %v105, 0.0
    %v112 = vmax.f32 %v107, 0.0
    %v113 = vpack.c.bf16 %v111, %v111
    %v114 = vpack.c.bf16 %v112, %v112
    %v115 = vld [vmem:[%s3] sm:$0xf]
    %v116 = vld [vmem:[%s3 + $0x4] sm:$0xf]
    %v117 = vld [vmem:[%s3 + $0x8] sm:$0xf]
    %v118 = vld [vmem:[%s3 + $0xc] sm:$0xf]
    %v119 = vld [vmem:[%s3 + $0x10] sm:$0xf]
    %v120 = vld [vmem:[%s3 + $0x14] sm:$0xf]
    %v121 = vld [vmem:[%s3 + $0x18] sm:$0xf]
    %v122 = vld [vmem:[%s3 + $0x1c] sm:$0xf]
    %v123 = vld [vmem:[%s3 + $0x20] sm:$0xf]
    %v124 = vld [vmem:[%s3 + $0x24] sm:$0xf]
    %v125 = vld [vmem:[%s3 + $0x28] sm:$0xf]
    %v126 = vld [vmem:[%s3 + $0x2c] sm:$0xf]
    %v127 = vld [vmem:[%s3 + $0x30] sm:$0xf]
    %v128 = vld [vmem:[%s3 + $0x34] sm:$0xf]
    %v129 = vld [vmem:[%s3 + $0x38] sm:$0xf]
    %v130 = vld [vmem:[%s3 + $0x3c] sm:$0xf]
    %v131 = vld [vmem:[%s3 + $0x40] sm:$0xf]
    %v132 = vld [vmem:[%s3 + $0x44] sm:$0xf]
    %v133 = vld [vmem:[%s3 + $0x48] sm:$0xf]
    %v134 = vld [vmem:[%s3 + $0x4c] sm:$0xf]
    %v135 = vld [vmem:[%s3 + $0x50] sm:$0xf]
    %v136 = vld [vmem:[%s3 + $0x54] sm:$0xf]
    %v137 = vld [vmem:[%s3 + $0x58] sm:$0xf]
    %v138 = vld [vmem:[%s3 + $0x5c] sm:$0xf]
    %v139 = vld [vmem:[%s3 + $0x60] sm:$0xf]
    %v140 = vld [vmem:[%s3 + $0x64] sm:$0xf]
    %v141 = vld [vmem:[%s3 + $0x68] sm:$0xf]
    %v142 = vld [vmem:[%s3 + $0x6c] sm:$0xf]
    %v143 = vld [vmem:[%s3 + $0x70] sm:$0xf]
    %v144 = vld [vmem:[%s3 + $0x74] sm:$0xf]
    %v145 = vld [vmem:[%s3 + $0x78] sm:$0xf]
    %v146 = vld [vmem:[%s3 + $0x7c] sm:$0xf]
    %v147 = vld [vmem:[%s4] sm:$0x1]
    %v149 = vlaneseq
    %v150 = vshrl.u32 %v149, 7
    %v151 = vsub.s32 0, %v150
    %v152 = vrot.slane %v147, %v151
    %v186 = vunpack.c.l.b16 %v115
    %v187 = vunpack.c.l.b16 %v116
    %v188 = vunpack.c.l.b16 %v117
    %v189 = vunpack.c.l.b16 %v118
    %v190 = vunpack.c.l.b16 %v119
    %v191 = vunpack.c.l.b16 %v120
    %v192 = vunpack.c.l.b16 %v121
    %v193 = vunpack.c.l.b16 %v122
    %v194 = vunpack.c.l.b16 %v123
    %v195 = vunpack.c.l.b16 %v124
    %v196 = vunpack.c.l.b16 %v125
    %v197 = vunpack.c.l.b16 %v126
    %v198 = vunpack.c.l.b16 %v127
    %v199 = vunpack.c.l.b16 %v128
    %v200 = vunpack.c.l.b16 %v129
    %v201 = vunpack.c.l.b16 %v130
    %v202 = vunpack.c.l.b16 %v131
    %v203 = vunpack.c.l.b16 %v132
    %v204 = vunpack.c.l.b16 %v133
    %v205 = vunpack.c.l.b16 %v134
    %v206 = vunpack.c.l.b16 %v135
    %v207 = vunpack.c.l.b16 %v136
    %v208 = vunpack.c.l.b16 %v137
    %v209 = vunpack.c.l.b16 %v138
    %v210 = vunpack.c.l.b16 %v139
    %v211 = vunpack.c.l.b16 %v140
    %v212 = vunpack.c.l.b16 %v141
    %v213 = vunpack.c.l.b16 %v142
    %v214 = vunpack.c.l.b16 %v143
    %v215 = vunpack.c.l.b16 %v144
    %v216 = vunpack.c.l.b16 %v145
    %v217 = vunpack.c.l.b16 %v146
    %v218 = vpack.c.b16 %v187, %v186
    %v219 = vpack.c.b16 %v189, %v188
    %v220 = vpack.c.b16 %v191, %v190
    %v221 = vpack.c.b16 %v193, %v192
    %v222 = vpack.c.b16 %v195, %v194
    %v223 = vpack.c.b16 %v197, %v196
    %v224 = vpack.c.b16 %v199, %v198
    %v225 = vpack.c.b16 %v201, %v200
    %v226 = vpack.c.b16 %v203, %v202
    %v227 = vpack.c.b16 %v205, %v204
    %v228 = vpack.c.b16 %v207, %v206
    %v229 = vpack.c.b16 %v209, %v208
    %v230 = vpack.c.b16 %v211, %v210
    %v231 = vpack.c.b16 %v213, %v212
    %v232 = vpack.c.b16 %v215, %v214
    %v233 = vpack.c.b16 %v217, %v216
    %250 = vmatprep.subr.bf16.mxu0 0
    %251 = vmatpush1.bf16.msra.mxu0 %v218
    %252 = vmatprep.subr.bf16.mxu0 0
    %253 = vmatpush1.bf16.msra.mxu0 %v219
    %254 = vmatprep.subr.bf16.mxu0 0
    %255 = vmatpush1.bf16.msra.mxu0 %v220
    %256 = vmatprep.subr.bf16.mxu0 0
    %257 = vmatpush1.bf16.msra.mxu0 %v221
    %258 = vmatprep.subr.bf16.mxu0 0
    %259 = vmatpush1.bf16.msra.mxu0 %v222
    %260 = vmatprep.subr.bf16.mxu0 0
    %261 = vmatpush1.bf16.msra.mxu0 %v223
    %262 = vmatprep.subr.bf16.mxu0 0
    %263 = vmatpush1.bf16.msra.mxu0 %v224
    %264 = vmatprep.subr.bf16.mxu0 0
    %265 = vmatpush1.bf16.msra.mxu0 %v225
    %266 = vmatprep.subr.bf16.mxu0 0
    %267 = vmatpush1.bf16.msra.mxu0 %v226
    %268 = vmatprep.subr.bf16.mxu0 0
    %269 = vmatpush1.bf16.msra.mxu0 %v227
    %270 = vmatprep.subr.bf16.mxu0 0
    %271 = vmatpush1.bf16.msra.mxu0 %v228
    %272 = vmatprep.subr.bf16.mxu0 0
    %273 = vmatpush1.bf16.msra.mxu0 %v229
    %274 = vmatprep.subr.bf16.mxu0 0
    %275 = vmatpush1.bf16.msra.mxu0 %v230
    %276 = vmatprep.subr.bf16.mxu0 0
    %277 = vmatpush1.bf16.msra.mxu0 %v231
    %278 = vmatprep.subr.bf16.mxu0 0
    %279 = vmatpush1.bf16.msra.mxu0 %v232
    %280 = vmatprep.subr.bf16.mxu0 0
    %281 = vmatpush1.bf16.msra.mxu0 %v233
    %282 = vmatprep.mubr.bf16.mxu0 %v114
    %283 = vmatmul.mubr.bf16.gmra.mrb[0].mxu0 %v113
    %v284 = vpop.f32.mrb[0].mxu0
    %v285 = vadd.f32 %v152, %v284
    %v286 = vpop.f32.mrb[0].mxu0
    %v287 = vpop.f32.mrb[0].mxu0
    %v288 = vpop.f32.mrb[0].mxu0
    %289 = vdwg.mxu0
    %v290 = vmax.f32 %v285, 0.0
    %v291 = vpack.c.bf16 %v290, %v290
    %v292 = vld [vmem:[%s5] sm:$0xff]
    %v293 = vld [vmem:[%s5 + $0x8] sm:$0xff]
    %v294 = vld [vmem:[%s5 + $0x10] sm:$0xff]
    %v295 = vld [vmem:[%s5 + $0x18] sm:$0xf]
    %v296 = vld [vmem:[%s5 + $0x1c] sm:$0xff]
    %v297 = vld [vmem:[%s5 + $0x24] sm:$0xff]
    %v298 = vld [vmem:[%s5 + $0x2c] sm:$0xff]
    %v299 = vld [vmem:[%s5 + $0x34] sm:$0xf]
    %v300 = vld [vmem:[%s5 + $0x38] sm:$0xff]
    %v301 = vld [vmem:[%s5 + $0x40] sm:$0xff]
    %v302 = vld [vmem:[%s5 + $0x48] sm:$0xff]
    %v303 = vld [vmem:[%s5 + $0x50] sm:$0xf]
    %v304 = vld [vmem:[%s5 + $0x54] sm:$0xff]
    %v305 = vld [vmem:[%s5 + $0x5c] sm:$0xff]
    %v306 = vld [vmem:[%s5 + $0x64] sm:$0xff]
    %v307 = vld [vmem:[%s5 + $0x6c] sm:$0xf]
    %v308 = vld [vmem:[%s5 + $0x70] sm:$0xff]
    %v309 = vld [vmem:[%s5 + $0x78] sm:$0xff]
    %v310 = vld [vmem:[%s5 + $0x80] sm:$0xff]
    %v311 = vld [vmem:[%s5 + $0x88] sm:$0xf]
    %v312 = vld [vmem:[%s5 + $0x8c] sm:$0xff]
    %v313 = vld [vmem:[%s5 + $0x94] sm:$0xff]
    %v314 = vld [vmem:[%s5 + $0x9c] sm:$0xff]
    %v315 = vld [vmem:[%s5 + $0xa4] sm:$0xf]
    %v316 = vld [vmem:[%s5 + $0xa8] sm:$0xff]
    %v317 = vld [vmem:[%s5 + $0xb0] sm:$0xff]
    %v318 = vld [vmem:[%s5 + $0xb8] sm:$0xff]
    %v319 = vld [vmem:[%s5 + $0xc0] sm:$0xf]
    %v320 = vld [vmem:[%s5 + $0xc4] sm:$0xff]
    %v321 = vld [vmem:[%s5 + $0xcc] sm:$0xff]
    %v322 = vld [vmem:[%s5 + $0xd4] sm:$0xff]
    %v323 = vld [vmem:[%s5 + $0xdc] sm:$0xf]
    %v324 = vld [vmem:[%s5 + $0xe0] sm:$0xff]
    %v325 = vld [vmem:[%s5 + $0xe8] sm:$0xff]
    %v326 = vld [vmem:[%s5 + $0xf0] sm:$0xff]
    %v327 = vld [vmem:[%s5 + $0xf8] sm:$0xf]
    %v328 = vld [vmem:[%s5 + $0xfc] sm:$0xff]
    %v329 = vld [vmem:[%s5 + $0x104] sm:$0xff]
    %v330 = vld [vmem:[%s5 + $0x10c] sm:$0xff]
    %v331 = vld [vmem:[%s5 + $0x114] sm:$0xf]
    %v332 = vld [vmem:[%s5 + $0x118] sm:$0xff]
    %v333 = vld [vmem:[%s5 + $0x120] sm:$0xff]
    %v334 = vld [vmem:[%s5 + $0x128] sm:$0xff]
    %v335 = vld [vmem:[%s5 + $0x130] sm:$0xf]
    %v336 = vld [vmem:[%s5 + $0x134] sm:$0xff]
    %v337 = vld [vmem:[%s5 + $0x13c] sm:$0xff]
    %v338 = vld [vmem:[%s5 + $0x144] sm:$0xff]
    %v339 = vld [vmem:[%s5 + $0x14c] sm:$0xf]
    %v340 = vld [vmem:[%s5 + $0x150] sm:$0xff]
    %v341 = vld [vmem:[%s5 + $0x158] sm:$0xff]
    %v342 = vld [vmem:[%s5 + $0x160] sm:$0xff]
    %v343 = vld [vmem:[%s5 + $0x168] sm:$0xf]
    %v344 = vld [vmem:[%s5 + $0x16c] sm:$0xff]
    %v345 = vld [vmem:[%s5 + $0x174] sm:$0xff]
    %v346 = vld [vmem:[%s5 + $0x17c] sm:$0xff]
    %v347 = vld [vmem:[%s5 + $0x184] sm:$0xf]
    %v348 = vld [vmem:[%s5 + $0x188] sm:$0xff]
    %v349 = vld [vmem:[%s5 + $0x190] sm:$0xff]
    %v350 = vld [vmem:[%s5 + $0x198] sm:$0xff]
    %v351 = vld [vmem:[%s5 + $0x1a0] sm:$0xf]
    %v352 = vld [vmem:[%s5 + $0x1a4] sm:$0xff]
    %v353 = vld [vmem:[%s5 + $0x1ac] sm:$0xff]
    %v354 = vld [vmem:[%s5 + $0x1b4] sm:$0xff]
    %v355 = vld [vmem:[%s5 + $0x1bc] sm:$0xf]
    %v356 = vld [vmem:[%s6] sm:$0x7f]
    %v358 = vlaneseq
    %v359 = vshrl.u32 %v358, 7
    %v360 = vsub.s32 0, %v359
    %v361 = vrot.slane %v356, %v360
    %v362 = vlaneseq
    %v363 = vshrl.u32 %v362, 7
    %v364 = vsub.s32 1, %v363
    %v365 = vrot.slane %v356, %v364
    %v366 = vlaneseq
    %v367 = vshrl.u32 %v366, 7
    %v368 = vsub.s32 2, %v367
    %v369 = vrot.slane %v356, %v368
    %v370 = vlaneseq
    %v371 = vshrl.u32 %v370, 7
    %v372 = vsub.s32 3, %v371
    %v373 = vrot.slane %v356, %v372
    %v374 = vlaneseq
    %v375 = vshrl.u32 %v374, 7
    %v376 = vsub.s32 4, %v375
    %v377 = vrot.slane %v356, %v376
    %v378 = vlaneseq
    %v379 = vshrl.u32 %v378, 7
    %v380 = vsub.s32 5, %v379
    %v381 = vrot.slane %v356, %v380
    %v382 = vlaneseq
    %v383 = vshrl.u32 %v382, 7
    %v384 = vsub.s32 6, %v383
    %v385 = vrot.slane %v356, %v384
    %v457 = vunpack.c.l.b16 %v292
    %v458 = vunpack.c.h.b16 %v292
    %v459 = vunpack.c.l.b16 %v293
    %v460 = vunpack.c.h.b16 %v293
    %v461 = vunpack.c.l.b16 %v294
    %v462 = vunpack.c.h.b16 %v294
    %v463 = vunpack.c.l.b16 %v295
    %v464 = vunpack.c.l.b16 %v296
    %v465 = vunpack.c.h.b16 %v296
    %v466 = vunpack.c.l.b16 %v297
    %v467 = vunpack.c.h.b16 %v297
    %v468 = vunpack.c.l.b16 %v298
    %v469 = vunpack.c.h.b16 %v298
    %v470 = vunpack.c.l.b16 %v299
    %v471 = vunpack.c.l.b16 %v300
    %v472 = vunpack.c.h.b16 %v300
    %v473 = vunpack.c.l.b16 %v301
    %v474 = vunpack.c.h.b16 %v301
    %v475 = vunpack.c.l.b16 %v302
    %v476 = vunpack.c.h.b16 %v302
    %v477 = vunpack.c.l.b16 %v303
    %v478 = vunpack.c.l.b16 %v304
    %v479 = vunpack.c.h.b16 %v304
    %v480 = vunpack.c.l.b16 %v305
    %v481 = vunpack.c.h.b16 %v305
    %v482 = vunpack.c.l.b16 %v306
    %v483 = vunpack.c.h.b16 %v306
    %v484 = vunpack.c.l.b16 %v307
    %v485 = vunpack.c.l.b16 %v308
    %v486 = vunpack.c.h.b16 %v308
    %v487 = vunpack.c.l.b16 %v309
    %v488 = vunpack.c.h.b16 %v309
    %v489 = vunpack.c.l.b16 %v310
    %v490 = vunpack.c.h.b16 %v310
    %v491 = vunpack.c.l.b16 %v311
    %v492 = vunpack.c.l.b16 %v312
    %v493 = vunpack.c.h.b16 %v312
    %v494 = vunpack.c.l.b16 %v313
    %v495 = vunpack.c.h.b16 %v313
    %v496 = vunpack.c.l.b16 %v314
    %v497 = vunpack.c.h.b16 %v314
    %v498 = vunpack.c.l.b16 %v315
    %v499 = vunpack.c.l.b16 %v316
    %v500 = vunpack.c.h.b16 %v316
    %v501 = vunpack.c.l.b16 %v317
    %v502 = vunpack.c.h.b16 %v317
    %v503 = vunpack.c.l.b16 %v318
    %v504 = vunpack.c.h.b16 %v318
    %v505 = vunpack.c.l.b16 %v319
    %v506 = vunpack.c.l.b16 %v320
    %v507 = vunpack.c.h.b16 %v320
    %v508 = vunpack.c.l.b16 %v321
    %v509 = vunpack.c.h.b16 %v321
    %v510 = vunpack.c.l.b16 %v322
    %v511 = vunpack.c.h.b16 %v322
    %v512 = vunpack.c.l.b16 %v323
    %v513 = vunpack.c.l.b16 %v324
    %v514 = vunpack.c.h.b16 %v324
    %v515 = vunpack.c.l.b16 %v325
    %v516 = vunpack.c.h.b16 %v325
    %v517 = vunpack.c.l.b16 %v326
    %v518 = vunpack.c.h.b16 %v326
    %v519 = vunpack.c.l.b16 %v327
    %v520 = vunpack.c.l.b16 %v328
    %v521 = vunpack.c.h.b16 %v328
    %v522 = vunpack.c.l.b16 %v329
    %v523 = vunpack.c.h.b16 %v329
    %v524 = vunpack.c.l.b16 %v330
    %v525 = vunpack.c.h.b16 %v330
    %v526 = vunpack.c.l.b16 %v331
    %v527 = vunpack.c.l.b16 %v332
    %v528 = vunpack.c.h.b16 %v332
    %v529 = vunpack.c.l.b16 %v333
    %v530 = vunpack.c.h.b16 %v333
    %v531 = vunpack.c.l.b16 %v334
    %v532 = vunpack.c.h.b16 %v334
    %v533 = vunpack.c.l.b16 %v335
    %v534 = vunpack.c.l.b16 %v336
    %v535 = vunpack.c.h.b16 %v336
    %v536 = vunpack.c.l.b16 %v337
    %v537 = vunpack.c.h.b16 %v337
    %v538 = vunpack.c.l.b16 %v338
    %v539 = vunpack.c.h.b16 %v338
    %v540 = vunpack.c.l.b16 %v339
    %v541 = vunpack.c.l.b16 %v340
    %v542 = vunpack.c.h.b16 %v340
    %v543 = vunpack.c.l.b16 %v341
    %v544 = vunpack.c.h.b16 %v341
    %v545 = vunpack.c.l.b16 %v342
    %v546 = vunpack.c.h.b16 %v342
    %v547 = vunpack.c.l.b16 %v343
    %v548 = vunpack.c.l.b16 %v344
    %v549 = vunpack.c.h.b16 %v344
    %v550 = vunpack.c.l.b16 %v345
    %v551 = vunpack.c.h.b16 %v345
    %v552 = vunpack.c.l.b16 %v346
    %v553 = vunpack.c.h.b16 %v346
    %v554 = vunpack.c.l.b16 %v347
    %v555 = vunpack.c.l.b16 %v348
    %v556 = vunpack.c.h.b16 %v348
    %v557 = vunpack.c.l.b16 %v349
    %v558 = vunpack.c.h.b16 %v349
    %v559 = vunpack.c.l.b16 %v350
    %v560 = vunpack.c.h.b16 %v350
    %v561 = vunpack.c.l.b16 %v351
    %v562 = vunpack.c.l.b16 %v352
    %v563 = vunpack.c.h.b16 %v352
    %v564 = vunpack.c.l.b16 %v353
    %v565 = vunpack.c.h.b16 %v353
    %v566 = vunpack.c.l.b16 %v354
    %v567 = vunpack.c.h.b16 %v354
    %v568 = vunpack.c.l.b16 %v355
    %v569 = vpack.c.b16 %v464, %v457
    %v570 = vpack.c.b16 %v465, %v458
    %v571 = vpack.c.b16 %v466, %v459
    %v572 = vpack.c.b16 %v467, %v460
    %v573 = vpack.c.b16 %v468, %v461
    %v574 = vpack.c.b16 %v469, %v462
    %v575 = vpack.c.b16 %v470, %v463
    %v576 = vpack.c.b16 %v478, %v471
    %v577 = vpack.c.b16 %v479, %v472
    %v578 = vpack.c.b16 %v480, %v473
    %v579 = vpack.c.b16 %v481, %v474
    %v580 = vpack.c.b16 %v482, %v475
    %v581 = vpack.c.b16 %v483, %v476
    %v582 = vpack.c.b16 %v484, %v477
    %v583 = vpack.c.b16 %v492, %v485
    %v584 = vpack.c.b16 %v493, %v486
    %v585 = vpack.c.b16 %v494, %v487
    %v586 = vpack.c.b16 %v495, %v488
    %v587 = vpack.c.b16 %v496, %v489
    %v588 = vpack.c.b16 %v497, %v490
    %v589 = vpack.c.b16 %v498, %v491
    %v590 = vpack.c.b16 %v506, %v499
    %v591 = vpack.c.b16 %v507, %v500
    %v592 = vpack.c.b16 %v508, %v501
    %v593 = vpack.c.b16 %v509, %v502
    %v594 = vpack.c.b16 %v510, %v503
    %v595 = vpack.c.b16 %v511, %v504
    %v596 = vpack.c.b16 %v512, %v505
    %v597 = vpack.c.b16 %v520, %v513
    %v598 = vpack.c.b16 %v521, %v514
    %v599 = vpack.c.b16 %v522, %v515
    %v600 = vpack.c.b16 %v523, %v516
    %v601 = vpack.c.b16 %v524, %v517
    %v602 = vpack.c.b16 %v525, %v518
    %v603 = vpack.c.b16 %v526, %v519
    %v604 = vpack.c.b16 %v534, %v527
    %v605 = vpack.c.b16 %v535, %v528
    %v606 = vpack.c.b16 %v536, %v529
    %v607 = vpack.c.b16 %v537, %v530
    %v608 = vpack.c.b16 %v538, %v531
    %v609 = vpack.c.b16 %v539, %v532
    %v610 = vpack.c.b16 %v540, %v533
    %v611 = vpack.c.b16 %v548, %v541
    %v612 = vpack.c.b16 %v549, %v542
    %v613 = vpack.c.b16 %v550, %v543
    %v614 = vpack.c.b16 %v551, %v544
    %v615 = vpack.c.b16 %v552, %v545
    %v616 = vpack.c.b16 %v553, %v546
    %v617 = vpack.c.b16 %v554, %v547
    %v618 = vpack.c.b16 %v562, %v555
    %v619 = vpack.c.b16 %v563, %v556
    %v620 = vpack.c.b16 %v564, %v557
    %v621 = vpack.c.b16 %v565, %v558
    %v622 = vpack.c.b16 %v566, %v559
    %v623 = vpack.c.b16 %v567, %v560
    %v624 = vpack.c.b16 %v568, %v561
    %681 = vmatprep.subr.bf16.mxu0 %v570
    %682 = vmatpush1.bf16.msra.mxu0 %v569
    %683 = vmatprep.subr.bf16.mxu0 %v577
    %684 = vmatpush1.bf16.msra.mxu0 %v576
    %685 = vmatprep.subr.bf16.mxu0 %v584
    %686 = vmatpush1.bf16.msra.mxu0 %v583
    %687 = vmatprep.subr.bf16.mxu0 %v591
    %688 = vmatpush1.bf16.msra.mxu0 %v590
    %689 = vmatprep.subr.bf16.mxu0 %v598
    %690 = vmatpush1.bf16.msra.mxu0 %v597
    %691 = vmatprep.subr.bf16.mxu0 %v605
    %692 = vmatpush1.bf16.msra.mxu0 %v604
    %693 = vmatprep.subr.bf16.mxu0 %v612
    %694 = vmatpush1.bf16.msra.mxu0 %v611
    %695 = vmatprep.subr.bf16.mxu0 %v619
    %696 = vmatpush1.bf16.msra.mxu0 %v618
    %697 = vmatprep.subr.bf16.mxu0 0
    %698 = vmatpush1.bf16.msra.mxu0 0
    %699 = vmatprep.subr.bf16.mxu0 0
    %700 = vmatpush1.bf16.msra.mxu0 0
    %701 = vmatprep.subr.bf16.mxu0 0
    %702 = vmatpush1.bf16.msra.mxu0 0
    %703 = vmatprep.subr.bf16.mxu0 0
    %704 = vmatpush1.bf16.msra.mxu0 0
    %705 = vmatprep.subr.bf16.mxu0 0
    %706 = vmatpush1.bf16.msra.mxu0 0
    %707 = vmatprep.subr.bf16.mxu0 0
    %708 = vmatpush1.bf16.msra.mxu0 0
    %709 = vmatprep.subr.bf16.mxu0 0
    %710 = vmatpush1.bf16.msra.mxu0 0
    %711 = vmatprep.subr.bf16.mxu0 0
    %712 = vmatpush1.bf16.msra.mxu0 0
    %713 = vmatprep.mubr.bf16.mxu0 0
    %714 = vmatmul.mubr.bf16.gmra.mrb[0].mxu0 %v291
    %v715 = vpop.f32.mrb[0].mxu0
    %v716 = vadd.f32 %v361, %v715
    %v717 = vpop.f32.mrb[0].mxu0
    %v718 = vadd.f32 %v365, %v717
    %v719 = vpop.f32.mrb[0].mxu0
    %v720 = vpop.f32.mrb[0].mxu0
    %721 = vdwg.mxu0
    %722 = vmatprep.subr.bf16.mxu0 %v572
    %723 = vmatpush1.bf16.msra.mxu0 %v571
    %724 = vmatprep.subr.bf16.mxu0 %v579
    %725 = vmatpush1.bf16.msra.mxu0 %v578
    %726 = vmatprep.subr.bf16.mxu0 %v586
    %727 = vmatpush1.bf16.msra.mxu0 %v585
    %728 = vmatprep.subr.bf16.mxu0 %v593
    %729 = vmatpush1.bf16.msra.mxu0 %v592
    %730 = vmatprep.subr.bf16.mxu0 %v600
    %731 = vmatpush1.bf16.msra.mxu0 %v599
    %732 = vmatprep.subr.bf16.mxu0 %v607
    %733 = vmatpush1.bf16.msra.mxu0 %v606
    %734 = vmatprep.subr.bf16.mxu0 %v614
    %735 = vmatpush1.bf16.msra.mxu0 %v613
    %736 = vmatprep.subr.bf16.mxu0 %v621
    %737 = vmatpush1.bf16.msra.mxu0 %v620
    %738 = vmatprep.subr.bf16.mxu0 0
    %739 = vmatpush1.bf16.msra.mxu0 0
    %740 = vmatprep.subr.bf16.mxu0 0
    %741 = vmatpush1.bf16.msra.mxu0 0
    %742 = vmatprep.subr.bf16.mxu0 0
    %743 = vmatpush1.bf16.msra.mxu0 0
    %744 = vmatprep.subr.bf16.mxu0 0
    %745 = vmatpush1.bf16.msra.mxu0 0
    %746 = vmatprep.subr.bf16.mxu0 0
    %747 = vmatpush1.bf16.msra.mxu0 0
    %748 = vmatprep.subr.bf16.mxu0 0
    %749 = vmatpush1.bf16.msra.mxu0 0
    %750 = vmatprep.subr.bf16.mxu0 0
    %751 = vmatpush1.bf16.msra.mxu0 0
    %752 = vmatprep.subr.bf16.mxu0 0
    %753 = vmatpush1.bf16.msra.mxu0 0
    %754 = vmatprep.mubr.bf16.mxu0 0
    %755 = vmatmul.mubr.bf16.gmra.mrb[0].mxu0 %v291
    %v756 = vpop.f32.mrb[0].mxu0
    %v757 = vadd.f32 %v369, %v756
    %v758 = vpop.f32.mrb[0].mxu0
    %v759 = vadd.f32 %v373, %v758
    %v760 = vpop.f32.mrb[0].mxu0
    %v761 = vpop.f32.mrb[0].mxu0
    %762 = vdwg.mxu0
    %763 = vmatprep.subr.bf16.mxu0 %v574
    %764 = vmatpush1.bf16.msra.mxu0 %v573
    %765 = vmatprep.subr.bf16.mxu0 %v581
    %766 = vmatpush1.bf16.msra.mxu0 %v580
    %767 = vmatprep.subr.bf16.mxu0 %v588
    %768 = vmatpush1.bf16.msra.mxu0 %v587
    %769 = vmatprep.subr.bf16.mxu0 %v595
    %770 = vmatpush1.bf16.msra.mxu0 %v594
    %771 = vmatprep.subr.bf16.mxu0 %v602
    %772 = vmatpush1.bf16.msra.mxu0 %v601
    %773 = vmatprep.subr.bf16.mxu0 %v609
    %774 = vmatpush1.bf16.msra.mxu0 %v608
    %775 = vmatprep.subr.bf16.mxu0 %v616
    %776 = vmatpush1.bf16.msra.mxu0 %v615
    %777 = vmatprep.subr.bf16.mxu0 %v623
    %778 = vmatpush1.bf16.msra.mxu0 %v622
    %779 = vmatprep.subr.bf16.mxu0 0
    %780 = vmatpush1.bf16.msra.mxu0 0
    %781 = vmatprep.subr.bf16.mxu0 0
    %782 = vmatpush1.bf16.msra.mxu0 0
    %783 = vmatprep.subr.bf16.mxu0 0
    %784 = vmatpush1.bf16.msra.mxu0 0
    %785 = vmatprep.subr.bf16.mxu0 0
    %786 = vmatpush1.bf16.msra.mxu0 0
    %787 = vmatprep.subr.bf16.mxu0 0
    %788 = vmatpush1.bf16.msra.mxu0 0
    %789 = vmatprep.subr.bf16.mxu0 0
    %790 = vmatpush1.bf16.msra.mxu0 0
    %791 = vmatprep.subr.bf16.mxu0 0
    %792 = vmatpush1.bf16.msra.mxu0 0
    %793 = vmatprep.subr.bf16.mxu0 0
    %794 = vmatpush1.bf16.msra.mxu0 0
    %795 = vmatprep.mubr.bf16.mxu0 0
    %796 = vmatmul.mubr.bf16.gmra.mrb[0].mxu0 %v291
    %v797 = vpop.f32.mrb[0].mxu0
    %v798 = vadd.f32 %v377, %v797
    %v799 = vpop.f32.mrb[0].mxu0
    %v800 = vadd.f32 %v381, %v799
    %v801 = vpop.f32.mrb[0].mxu0
    %v802 = vpop.f32.mrb[0].mxu0
    %803 = vdwg.mxu0
    %804 = vmatprep.subr.bf16.mxu0 0
    %805 = vmatpush1.bf16.msra.mxu0 %v575
    %806 = vmatprep.subr.bf16.mxu0 0
    %807 = vmatpush1.bf16.msra.mxu0 %v582
    %808 = vmatprep.subr.bf16.mxu0 0
    %809 = vmatpush1.bf16.msra.mxu0 %v589
    %810 = vmatprep.subr.bf16.mxu0 0
    %811 = vmatpush1.bf16.msra.mxu0 %v596
    %812 = vmatprep.subr.bf16.mxu0 0
    %813 = vmatpush1.bf16.msra.mxu0 %v603
    %814 = vmatprep.subr.bf16.mxu0 0
    %815 = vmatpush1.bf16.msra.mxu0 %v610
    %816 = vmatprep.subr.bf16.mxu0 0
    %817 = vmatpush1.bf16.msra.mxu0 %v617
    %818 = vmatprep.subr.bf16.mxu0 0
    %819 = vmatpush1.bf16.msra.mxu0 %v624
    %820 = vmatprep.subr.bf16.mxu0 0
    %821 = vmatpush1.bf16.msra.mxu0 0
    %822 = vmatprep.subr.bf16.mxu0 0
    %823 = vmatpush1.bf16.msra.mxu0 0
    %824 = vmatprep.subr.bf16.mxu0 0
    %825 = vmatpush1.bf16.msra.mxu0 0
    %826 = vmatprep.subr.bf16.mxu0 0
    %827 = vmatpush1.bf16.msra.mxu0 0
    %828 = vmatprep.subr.bf16.mxu0 0
    %829 = vmatpush1.bf16.msra.mxu0 0
    %830 = vmatprep.subr.bf16.mxu0 0
    %831 = vmatpush1.bf16.msra.mxu0 0
    %832 = vmatprep.subr.bf16.mxu0 0
    %833 = vmatpush1.bf16.msra.mxu0 0
    %834 = vmatprep.subr.bf16.mxu0 0
    %835 = vmatpush1.bf16.msra.mxu0 0
    %836 = vmatprep.mubr.bf16.mxu0 0
    %837 = vmatmul.mubr.bf16.gmra.mrb[0].mxu0 %v291
    %v838 = vpop.f32.mrb[0].mxu0
    %v839 = vadd.f32 %v385, %v838
    %v840 = vpop.f32.mrb[0].mxu0
    %v841 = vpop.f32.mrb[0].mxu0
    %v842 = vpop.f32.mrb[0].mxu0
    %843 = vdwg.mxu0
    %v844 = vtanh.pop %v716
    %v845 = vtanh.pop %v718
    %v846 = vtanh.pop %v757
    %v847 = vtanh.pop %v759
    %v848 = vtanh.pop %v798
    %v849 = vtanh.pop %v800
    %v850 = vtanh.pop %v839
    %v851 = vmul.f32 %v844, 0.5
    %v852 = vmul.f32 %v845, 0.5
    %v853 = vmul.f32 %v846, 0.5
    %v854 = vmul.f32 %v847, 0.5
    %v855 = vmul.f32 %v848, 0.5
    %v856 = vmul.f32 %v849, 0.5
    %v857 = vmul.f32 %v850, 0.5
    %v858 = vadd.f32 %v851, 0.5
    %v859 = vadd.f32 %v852, 0.5
    %v860 = vadd.f32 %v853, 0.5
    %v861 = vadd.f32 %v854, 0.5
    %v862 = vadd.f32 %v855, 0.5
    %v863 = vadd.f32 %v856, 0.5
    %v864 = vadd.f32 %v857, 0.5
    %865 = vst [vmem:[#allocation2] sm:$0xff] %v858
    %866 = vst [vmem:[#allocation2 + $0x8] sm:$0xff] %v859
    %867 = vst [vmem:[#allocation2 + $0x10] sm:$0xff] %v860
    %868 = vst [vmem:[#allocation2 + $0x18] sm:$0xff] %v861
    %869 = vst [vmem:[#allocation2 + $0x20] sm:$0xff] %v862
    %870 = vst [vmem:[#allocation2 + $0x28] sm:$0xff] %v863
    %vm871 = vcmask 130048
    %872 = vst.msk [vmem:[#allocation2 + $0x30] sm:$0xff] %vm871, %v864
    // Predicated region
    $region30: #{tpu_custom_call.1} parent=1 // pred_check
      _
    $region31: #{tpu_custom_call.1} parent=1 // pred_check_branch
      %874 = sbr.rel (0) target = $region33
    $region32: #{tpu_custom_call.1} parent=1 // pred_region
      %s876 = ssub.s32 896, 896
      %877 = vsyncadd [#allocation3], %s876
      %s879 = sshll.u32 [#allocation2], 4
      %s880 = int_to_ptr.vmem [resolvable:$true] %s879
      %882 = dma.vmem_to_hbm [thread:$0]  %s880, 896, %s7, [#allocation3]
    $region33: #{tpu_custom_call.1} parent=1 // pred_fallthru
      _
    // Predicated region
    $region34: #{tpu_custom_call.1} parent=1 // pred_check
      _
    $region35: #{tpu_custom_call.1} parent=1 // pred_check_branch
      %884 = sbr.rel (0) target = $region37
    $region36: #{tpu_custom_call.1} parent=1 // pred_region
      %885 = dma.done [#allocation3], 896
    $region37: #{tpu_custom_call.1} parent=1 // pred_fallthru
      _
    %886 = vsyncpa [#allocation3], 1

</llo_original>
